<compile_context>
chip_gen: v5e
topology: v5e:2x2
jax: 0.10.0
libtpu: 0.0.40
codegen_flags: <defaults>
</compile_context>

<pallas_src>
import math

import jax
import jax.numpy as jnp
from jax.experimental import pallas as pl
from jax.experimental.pallas import tpu as pltpu


_TARGET_BLOCK_BYTES = 4 * 1024 * 1024   # ~4 MiB x-block: 2-8 MiB sweet spot, all gens
_MAX_LANE_TILE = 2048                   # lane tile target (multiple of 128)
_VMEM_LIMIT = 48 * 1024 * 1024          # explicit scoped-VMEM budget


def _mul_kernel(x_ref, m_ref, o_ref):
    # Single fused multiply; m broadcasts over the size-1 (dropped) axis.
    o_ref[...] = x_ref[...] * m_ref[...]


def _row_tile(rows, row_bytes):
    """Pick a sublane-legal row tile (multiple of 8 or the full extent)."""
    tr = max(1, _TARGET_BLOCK_BYTES // max(1, row_bytes))
    tr = min(rows, max(8, (tr // 8) * 8))
    return rows if tr >= rows else tr


def pallas_dropout(x, key, *, p_drop: float = 0.15, broadcast_dim=None,
                   training: bool = True):
    """Training-mode Dropout matching rfdiffusion.util_module.Dropout.forward."""
    if not training or p_drop <= 0.0:
        return x

    shape = x.shape
    ndim = len(shape)
    itemsize = jnp.dtype(x.dtype).itemsize
    scale = 1.0 / (1.0 - p_drop)

    # ------------------------------------------------------------------
    # Elementwise dropout (broadcast_dim is None): flat lane-dense 2D layout.
    # ------------------------------------------------------------------
    if broadcast_dim is None:
        n = math.prod(shape) if ndim > 0 else 1
        c = None
        for cand in (2048, 1024, 512, 256, 128):
            if n % cand == 0:
                c = cand
                break
        if c is None:
            c = shape[-1] if ndim >= 1 else 1
        rows = n // c

        x2 = x.reshape(rows, c)
        keep = jax.random.bernoulli(key, 1.0 - p_drop, (rows, c))
        mfac = jnp.where(keep, scale, 0.0).astype(x.dtype)

        tr = _row_tile(rows, c * itemsize)
        spec = pl.BlockSpec((tr, c), lambda i: (i, 0))
        out2 = pl.pallas_call(
            _mul_kernel,
            out_shape=jax.ShapeDtypeStruct((rows, c), x.dtype),
            grid=(pl.cdiv(rows, tr),),
            in_specs=[spec, spec],
            out_specs=spec,
            compiler_params=pltpu.CompilerParams(
                dimension_semantics=("parallel",),
                vmem_limit_bytes=_VMEM_LIMIT),
        )(x2, mfac)
        return out2.reshape(shape)

    # ------------------------------------------------------------------
    # Broadcast dropout: x viewed as (pre, bdim, post); one mask per (pre, post).
    # ------------------------------------------------------------------
    d = broadcast_dim % ndim
    pre = math.prod(shape[:d]) if d > 0 else 1
    bdim = shape[d]
    post = math.prod(shape[d + 1:]) if d + 1 < ndim else 1

    if post == 1:
        # Broadcast over the trailing axis: put bdim on lanes for dense stores.
        x2 = x.reshape(pre, bdim)
        keep = jax.random.bernoulli(key, 1.0 - p_drop, (pre, 1))
        mfac = jnp.where(keep, scale, 0.0).astype(x.dtype)

        tr = _row_tile(pre, bdim * itemsize)
        out2 = pl.pallas_call(
            _mul_kernel,
            out_shape=jax.ShapeDtypeStruct((pre, bdim), x.dtype),
            grid=(pl.cdiv(pre, tr),),
            in_specs=[pl.BlockSpec((tr, bdim), lambda i: (i, 0)),
                      pl.BlockSpec((tr, 1), lambda i: (i, 0))],
            out_specs=pl.BlockSpec((tr, bdim), lambda i: (i, 0)),
            compiler_params=pltpu.CompilerParams(
                dimension_semantics=("parallel",),
                vmem_limit_bytes=_VMEM_LIMIT),
        )(x2, mfac)
        return out2.reshape(shape)

    x3 = x.reshape(pre, bdim, post)
    keep = jax.random.bernoulli(key, 1.0 - p_drop, (pre, 1, post))
    mfac = jnp.where(keep, scale, 0.0).astype(x.dtype)

    # Lane tile over post: multiple of 128 when possible, else full extent.
    pt = min(post, _MAX_LANE_TILE) if post % 128 == 0 else post
    # Tile the broadcast axis only if one (bdim, pt) slab is already too big.
    if bdim * pt * itemsize <= _TARGET_BLOCK_BYTES:
        tb = bdim
    else:
        tb = max(8, ((_TARGET_BLOCK_BYTES // (pt * itemsize)) // 8) * 8)
        tb = bdim if tb >= bdim else tb
    # Batch `pre` rows so each x block is a few MiB.
    tp = max(1, _TARGET_BLOCK_BYTES // (tb * pt * itemsize))
    tp = min(pre, tp)

    grid = (pl.cdiv(pre, tp), pl.cdiv(bdim, tb), pl.cdiv(post, pt))
    x_spec = pl.BlockSpec((tp, tb, pt), lambda i, k, j: (i, k, j))
    # Mask is a pure function of the (pre, post) tile indices -> constant
    # along the broadcast axis, preserving the torch semantics.
    m_spec = pl.BlockSpec((tp, 1, pt), lambda i, k, j: (i, 0, j))

    out3 = pl.pallas_call(
        _mul_kernel,
        out_shape=jax.ShapeDtypeStruct((pre, bdim, post), x.dtype),
        grid=grid,
        in_specs=[x_spec, m_spec],
        out_specs=x_spec,
        compiler_params=pltpu.CompilerParams(
            dimension_semantics=("parallel", "parallel", "parallel"),
            vmem_limit_bytes=_VMEM_LIMIT),
    )(x3, mfac)
    return out3.reshape(shape)


if __name__ == "__main__":
    key = jax.random.PRNGKey(0)
    kx, kb, ke = jax.random.split(key, 3)
    x = jax.random.normal(kx, (2, 8, 8, 32), dtype=jnp.float32)
    p_drop = 0.15
    scale = 1.0 / (1.0 - p_drop)

    # Case 1: broadcast_dim=1 (mask shared along axis 1).
    out_b = jax.block_until_ready(
        pallas_dropout(x, kb, p_drop=p_drop, broadcast_dim=1, training=True))

    # Case 2: broadcast_dim=None (fully elementwise dropout).
    out_e = jax.block_until_ready(
        pallas_dropout(x, ke, p_drop=p_drop, broadcast_dim=None, training=True))

    # Case 3: broadcast over the last axis (lane-swapped fast path).
    out_l = jax.block_until_ready(
        pallas_dropout(x, kb, p_drop=p_drop, broadcast_dim=-1, training=True))

    # Surviving elements are exactly x / (1-p); dropped elements are 0.
    for out in (out_b, out_e, out_l):
        kept = out != 0.0
        assert jnp.allclose(jnp.where(kept, out, 0.0),
                            jnp.where(kept, x * scale, 0.0),
                            rtol=1e-6, atol=1e-6)

    # Broadcast masks are constant along the broadcast dimension.
    mask_b = (out_b != 0.0)
    assert bool(jnp.all(mask_b == mask_b[:, :1]))
    mask_l = (out_l != 0.0)
    assert bool(jnp.all(mask_l == mask_l[..., :1]))

    # Eval mode is the identity.
    assert bool(jnp.all(pallas_dropout(x, kb, p_drop=p_drop,
                                       broadcast_dim=1, training=False) == x))

    print("KERNEL_OK")
</pallas_src>

<mosaic_0001>
module attributes {stable_mosaic.version = 11 : i64} {
  func.func @_mul_kernel(%arg0: i32, %arg1: i32, %arg2: i32, %arg3: memref<2x8x256xf32, #tpu.memory_space<vmem>>, %arg4: memref<2x1x256xf32, #tpu.memory_space<vmem>>, %arg5: memref<2x8x256xf32, #tpu.memory_space<vmem>>) attributes {dimension_semantics = [#tpu.dimension_semantics<parallel>, #tpu.dimension_semantics<parallel>, #tpu.dimension_semantics<parallel>], iteration_bounds = array<i64: 1, 1, 1>, scalar_prefetch = 0 : i64, scratch_operands = 0 : i64, tpu.core_type = #tpu.core_type<tc>, window_params = [{transform_indices = @transform_0, window_bounds = array<i64: 2, 8, 256>}, {transform_indices = @transform_1, window_bounds = array<i64: 2, 1, 256>}, {transform_indices = @transform_2, window_bounds = array<i64: 2, 8, 256>}]} {
    %c0 = arith.constant 0 : index
    %c0_0 = arith.constant 0 : index
    %c0_1 = arith.constant 0 : index
    %0 = vector.load %arg3[%c0, %c0_0, %c0_1] : memref<2x8x256xf32, #tpu.memory_space<vmem>>, vector<2x8x256xf32>
    %c0_2 = arith.constant 0 : index
    %c0_3 = arith.constant 0 : index
    %c0_4 = arith.constant 0 : index
    %1 = vector.load %arg4[%c0_2, %c0_3, %c0_4] : memref<2x1x256xf32, #tpu.memory_space<vmem>>, vector<2x1x256xf32>
    %2 = vector.broadcast %1 : vector<2x1x256xf32> to vector<2x8x256xf32>
    %3 = arith.mulf %0, %2 : vector<2x8x256xf32>
    %c0_5 = arith.constant 0 : index
    %c0_6 = arith.constant 0 : index
    %c0_7 = arith.constant 0 : index
    %4 = vector.load %arg5[%c0_5, %c0_6, %c0_7] : memref<2x8x256xf32, #tpu.memory_space<vmem>>, vector<2x8x256xf32>
    tpu.vector_store %arg5[%c0_5, %c0_6, %c0_7], %3 {strides = array<i32>} : memref<2x8x256xf32, #tpu.memory_space<vmem>>, vector<2x8x256xf32>,
    return
  }
  func.func @transform_0(%arg0: i32, %arg1: i32, %arg2: i32) -> (i32, i32, i32) {
    %c0_i32 = arith.constant 0 : i32
    return %arg0, %arg1, %arg2 : i32, i32, i32
  }
  func.func @transform_1(%arg0: i32, %arg1: i32, %arg2: i32) -> (i32, i32, i32) {
    %c0_i32 = arith.constant 0 : i32
    %c0_i32_0 = arith.constant 0 : i32
    return %arg0, %c0_i32, %arg2 : i32, i32, i32
  }
  func.func @transform_2(%arg0: i32, %arg1: i32, %arg2: i32) -> (i32, i32, i32) {
    %c0_i32 = arith.constant 0 : i32
    return %arg0, %arg1, %arg2 : i32, i32, i32
  }
}

</mosaic_0001>

<llo_original>
// kernel: tpu_custom_call.1
$region0: #{tpu_custom_call.1}
  #allocation0 [shape = 'u32[]', space=smem, size = 0x4, offset = 0x4, fixed_abs, tag = 'smem constant byte address 0x4 - core index']
  #allocation1 [shape = 'u32[72,128]{1,0:T(1,128)}', space=vmem, size = 0x9000, scoped, tag = 'internal scratch']
  %s0 = inlined_call_operand.hbm [shape: f32[2,8,256], index: 0, kind: input, shape index: {}]
  %s1 = inlined_call_operand.hbm [shape: f32[2,1,256], index: 1, kind: input, shape index: {}]
  %s2 = inlined_call_operand.hbm [shape: f32[2,8,256], index: 2, kind: output, shape index: {}]
  %s3 = sld [smem:[#allocation0]]
  $region26: #{tpu_custom_call.1} parent=0
    _
  %s5 = ssub.s32 1, %s3
  %s6 = scalar_select 0, %s5, %s3
  $region1: #{tpu_custom_call.1} parent=0
    #allocation2 [shape = 'u8[16384]{0}', space=vmem, size = 0x4000, scoped, tag = 'input window, operand 0, single buffered']
    #allocation3 [shape = 's32[1]{0}', space=sflag, size = 0x4, scoped, tag = 'scoped memory for tpu_custom_call.1']
    #allocation4 [shape = 's32[1]{0}', space=sflag, size = 0x4, scoped, tag = 'scoped memory for tpu_custom_call.1']
    #allocation5 [shape = 'u8[2048]{0}', space=vmem, size = 0x800, scoped, tag = 'input window, operand 1, single buffered']
    #allocation6 [shape = 's32[1]{0}', space=sflag, size = 0x4, scoped, tag = 'scoped memory for tpu_custom_call.1']
    #allocation7 [shape = 'u8[16384]{0}', space=vmem, size = 0x4000, scoped, tag = 'output window, operand 0, single buffered']
    %7 = vsyncpa [#allocation3], 0
    %8 = vsyncpa [#allocation6], 0
    %9 = vsyncpa [#allocation4], 0
    // Predicated region
    $region2: #{tpu_custom_call.1} parent=1 // pred_check
      _
    $region3: #{tpu_custom_call.1} parent=1 // pred_check_branch
      %11 = sbr.rel (0) target = $region5
    $region4: #{tpu_custom_call.1} parent=1 // pred_region
      %13 = vsyncadd [#allocation3], 0
      %s14 = sshll.u32 %s0, 4
      %s15 = int_to_ptr.hbm [resolvable:$true] %s14
      %s16 = sshll.u32 [#allocation2], 4
      %s17 = int_to_ptr.vmem [resolvable:$true] %s16
      %22 = dma.hbm_to_vmem [thread:$0]  %s15, 512, %s17, [#allocation3], 256, 256, 16
    $region5: #{tpu_custom_call.1} parent=1 // pred_fallthru
      _
    // Predicated region
    $region6: #{tpu_custom_call.1} parent=1 // pred_check
      _
    $region7: #{tpu_custom_call.1} parent=1 // pred_check_branch
      %24 = sbr.rel (0) target = $region9
    $region8: #{tpu_custom_call.1} parent=1 // pred_region
      %26 = vsyncadd [#allocation6], 0
      %s27 = sshll.u32 %s1, 4
      %s28 = int_to_ptr.hbm [resolvable:$true] %s27
      %s29 = sshll.u32 [#allocation5], 4
      %s30 = int_to_ptr.vmem [resolvable:$true] %s29
      %35 = dma.hbm_to_vmem [thread:$0]  %s28, 64, %s30, [#allocation6], 32, 32, 2
    $region9: #{tpu_custom_call.1} parent=1 // pred_fallthru
      _
    // Predicated region
    $region10: #{tpu_custom_call.1} parent=1 // pred_check
      _
    $region11: #{tpu_custom_call.1} parent=1 // pred_check_branch
      %37 = sbr.rel (0) target = $region13
    $region12: #{tpu_custom_call.1} parent=1 // pred_region
      %39 = dma.done [#allocation3], 512
    $region13: #{tpu_custom_call.1} parent=1 // pred_fallthru
      _
    // Predicated region
    $region14: #{tpu_custom_call.1} parent=1 // pred_check
      _
    $region15: #{tpu_custom_call.1} parent=1 // pred_check_branch
      %41 = sbr.rel (0) target = $region17
    $region16: #{tpu_custom_call.1} parent=1 // pred_region
      %43 = dma.done [#allocation6], 64
    $region17: #{tpu_custom_call.1} parent=1 // pred_fallthru
      _
    %v44 = vld [vmem:[#allocation2] sm:$0xff]
    %v45 = vld [vmem:[#allocation2 + $0x8] sm:$0xff]
    %v46 = vld [vmem:[#allocation2 + $0x10] sm:$0xff]
    %v47 = vld [vmem:[#allocation2 + $0x18] sm:$0xff]
    %v48 = vld [vmem:[#allocation5] sm:$0x3]
    %v49 = vld [vmem:[#allocation5 + $0x2] sm:$0x3]
    %v52 = vperm.slane %v48, 0
    %v53 = vperm.slane %v48, 1
    %v54 = vperm.slane %v49, 0
    %v55 = vperm.slane %v49, 1
    %v60 = vmul.f32 %v44, %v52
    %v61 = vmul.f32 %v45, %v53
    %v62 = vmul.f32 %v46, %v54
    %v63 = vmul.f32 %v47, %v55
    %64 = vst [vmem:[#allocation7] sm:$0xff] %v60
    %65 = vst [vmem:[#allocation7 + $0x8] sm:$0xff] %v61
    %66 = vst [vmem:[#allocation7 + $0x10] sm:$0xff] %v62
    %67 = vst [vmem:[#allocation7 + $0x18] sm:$0xff] %v63
    // Predicated region
    $region18: #{tpu_custom_call.1} parent=1 // pred_check
      _
    $region19: #{tpu_custom_call.1} parent=1 // pred_check_branch
      %69 = sbr.rel (0) target = $region21
    $region20: #{tpu_custom_call.1} parent=1 // pred_region
      %71 = vsyncadd [#allocation4], 0
      %s72 = sshll.u32 [#allocation7], 4
      %s73 = int_to_ptr.vmem [resolvable:$true] %s72
      %s74 = sshll.u32 %s2, 4
      %s75 = int_to_ptr.hbm [resolvable:$true] %s74
      %80 = dma.vmem_to_hbm [thread:$0]  %s73, 512, %s75, [#allocation4], 256, 256, 16
    $region21: #{tpu_custom_call.1} parent=1 // pred_fallthru
      _
    // Predicated region
    $region22: #{tpu_custom_call.1} parent=1 // pred_check
      _
    $region23: #{tpu_custom_call.1} parent=1 // pred_check_branch
      %82 = sbr.rel (0) target = $region25
    $region24: #{tpu_custom_call.1} parent=1 // pred_region
      %84 = dma.done [#allocation4], 512
    $region25: #{tpu_custom_call.1} parent=1 // pred_fallthru
      _
    %85 = vsyncpa [#allocation3], 1
    %86 = vsyncpa [#allocation6], 1
    %87 = vsyncpa [#allocation4], 1

</llo_original>
